<compile_context>
chip_gen: v7x
topology: tpu7x:2x2x1
jax: 0.10.0
libtpu: 0.0.40
codegen_flags: <defaults>
</compile_context>

<pallas_src>
import math
import functools

import jax
import jax.numpy as jnp
from jax.experimental import pallas as pl
from jax.experimental.pallas import tpu as pltpu


# ----------------------------------------------------------------------------
# Tile helper
# ----------------------------------------------------------------------------

def _tile(dim, target, align):
    """Largest tile <= target that divides `dim` and is a multiple of `align`.

    Falls back to the full dimension (always a legal block) only when no such
    divisor exists (rare: prime-ish dims).
    """
    if dim <= target:
        return dim
    t = (target // align) * align
    while t >= align:
        if dim % t == 0:
            return t
        t -= align
    # TODO(synk): pad/mask partial tiles instead of the full-dim fallback.
    return dim


# ----------------------------------------------------------------------------
# Pallas kernels
# ----------------------------------------------------------------------------

def _linear_kernel(x_ref, w_ref, b_ref, o_ref, acc_ref):
    """One (tm, tn) output tile, accumulating over the K grid axis."""
    @pl.when(pl.program_id(2) == 0)
    def _():
        acc_ref[...] = jnp.zeros_like(acc_ref)

    acc_ref[...] += jnp.dot(x_ref[...], w_ref[...],
                            preferred_element_type=jnp.float32)

    @pl.when(pl.program_id(2) == pl.num_programs(2) - 1)
    def _():
        o_ref[...] = (acc_ref[...] + b_ref[...]).astype(o_ref.dtype)


def _flash_attn_kernel(*refs, has_bias):
    """Flash-attention step for one (batch, head, q-block, kv-block) grid point.

    q_ref : [tq, dh] bf16 (Q already pre-scaled by 1/sqrt(d_head))
    k_ref : [tk, dh] bf16
    v_ref : [tk, dh] bf16
    bias  : [tq, tk] bf16 additive mask bias (0 or -1e6), optional
    o_ref : [tq, dh] bf16 (written on the last KV step)
    m/l   : [tq, 1]  f32 online-softmax running max / denom
    acc   : [tq, dh] f32 running numerator
    """
    if has_bias:
        q_ref, k_ref, v_ref, bias_ref, o_ref, m_ref, l_ref, acc_ref = refs
    else:
        q_ref, k_ref, v_ref, o_ref, m_ref, l_ref, acc_ref = refs
        bias_ref = None

    kv_idx = pl.program_id(3)

    @pl.when(kv_idx == 0)
    def _():
        m_ref[...] = jnp.full_like(m_ref, -jnp.inf)
        l_ref[...] = jnp.zeros_like(l_ref)
        acc_ref[...] = jnp.zeros_like(acc_ref)

    q = q_ref[...]                                   # [tq, dh] bf16
    k = k_ref[...]                                   # [tk, dh] bf16
    v = v_ref[...]                                   # [tk, dh] bf16

    # q @ k^T without materializing a transpose (contract last dims).
    s = jax.lax.dot_general(q, k, (((1,), (1,)), ((), ())),
                            preferred_element_type=jnp.float32)  # [tq, tk] f32
    if has_bias:
        # Additive bias (0 / -1e6) ~= torch's masked_fill(mask == 0, -1e6);
        # single VPU add per score instead of compare+select.
        s = s + bias_ref[...].astype(jnp.float32)

    m_prev = m_ref[...]                              # [tq, 1]
    m_new = jnp.maximum(m_prev, jnp.max(s, axis=-1, keepdims=True))
    alpha = jnp.exp(m_prev - m_new)
    p = jnp.exp(s - m_new)                           # [tq, tk] f32

    l_ref[...] = alpha * l_ref[...] + jnp.sum(p, axis=-1, keepdims=True)
    acc_ref[...] = alpha * acc_ref[...] + jnp.dot(
        p.astype(v.dtype), v, preferred_element_type=jnp.float32)
    m_ref[...] = m_new

    @pl.when(kv_idx == pl.num_programs(3) - 1)
    def _():
        inv_l = pl.reciprocal(l_ref[...], approx=False)   # exact: once per tile
        o_ref[...] = (acc_ref[...] * inv_l).astype(o_ref.dtype)


# ----------------------------------------------------------------------------
# Kernel wrappers
# ----------------------------------------------------------------------------

_VMEM_LIMIT = 32 * 1024 * 1024   # safe on v5e/v6e/v7x; ample for these tiles


def linear(x, w, b, *, out_dtype=jnp.float32):
    """x: [..., K] @ w: [K, N] + b: [N] -> [..., N], bf16 MXU / f32 accumulate."""
    lead = x.shape[:-1]
    K = x.shape[-1]
    N = w.shape[-1]
    x2 = x.reshape(-1, K).astype(jnp.bfloat16)
    w2 = w.astype(jnp.bfloat16)                      # no-op if pre-cast
    b2 = b.reshape(1, N).astype(jnp.float32)
    M = x2.shape[0]

    tm = _tile(M, 512, 8)
    tn = _tile(N, 512, 128)
    tk = _tile(K, 512, 128)
    grid = (M // tm, N // tn, K // tk)

    out = pl.pallas_call(
        _linear_kernel,
        out_shape=jax.ShapeDtypeStruct((M, N), out_dtype),
        grid=grid,
        in_specs=[pl.BlockSpec((tm, tk), lambda i, j, k: (i, k)),
                  pl.BlockSpec((tk, tn), lambda i, j, k: (k, j)),
                  pl.BlockSpec((1, tn), lambda i, j, k: (0, j))],
        out_specs=pl.BlockSpec((tm, tn), lambda i, j, k: (i, j)),
        scratch_shapes=[pltpu.VMEM((tm, tn), jnp.float32)],
        compiler_params=pltpu.CompilerParams(
            dimension_semantics=("parallel", "parallel", "arbitrary"),
            vmem_limit_bytes=_VMEM_LIMIT),
    )(x2, w2, b2)
    return out.reshape(*lead, N)


def flash_attention(q, k, v, mask=None, *, tq_target=256, tk_target=512):
    """q/k/v: [B, H, S, dh] bf16 (Q pre-scaled).  Returns [B, H, Sq, dh] bf16."""
    B, H, Sq, dh = q.shape
    Sk = k.shape[2]

    tq = _tile(Sq, tq_target, 8)
    tk = _tile(Sk, tk_target, 128)   # also the lane dim of the bias block

    has_bias = mask is not None
    args = [q, k, v]
    in_specs = [
        pl.BlockSpec((pl.Squeezed(), pl.Squeezed(), tq, dh),
                     lambda b, h, i, j: (b, h, i, 0)),
        pl.BlockSpec((pl.Squeezed(), pl.Squeezed(), tk, dh),
                     lambda b, h, i, j: (b, h, j, 0)),
        pl.BlockSpec((pl.Squeezed(), pl.Squeezed(), tk, dh),
                     lambda b, h, i, j: (b, h, j, 0)),
    ]
    if has_bias:
        # Single [Sq, Sk] additive-bias tile shared by every (batch, head);
        # stored bf16 to halve HBM/VMEM footprint.
        mask2 = mask.astype(jnp.float32).reshape(mask.shape[-2], mask.shape[-1])
        bias = jnp.where(mask2 == 0.0, -1e6, 0.0).astype(jnp.bfloat16)
        args.append(bias)
        in_specs.append(pl.BlockSpec((tq, tk), lambda b, h, i, j: (i, j)))

    kernel = functools.partial(_flash_attn_kernel, has_bias=has_bias)

    return pl.pallas_call(
        kernel,
        out_shape=jax.ShapeDtypeStruct((B, H, Sq, dh), jnp.bfloat16),
        grid=(B, H, Sq // tq, Sk // tk),
        in_specs=in_specs,
        out_specs=pl.BlockSpec((pl.Squeezed(), pl.Squeezed(), tq, dh),
                               lambda b, h, i, j: (b, h, i, 0)),
        scratch_shapes=[pltpu.VMEM((tq, 1), jnp.float32),     # running max
                        pltpu.VMEM((tq, 1), jnp.float32),     # running denom
                        pltpu.VMEM((tq, dh), jnp.float32)],   # running numerator
        compiler_params=pltpu.CompilerParams(
            dimension_semantics=("parallel", "parallel", "parallel", "arbitrary"),
            vmem_limit_bytes=_VMEM_LIMIT),
    )(*args)


# ----------------------------------------------------------------------------
# Parameter preparation (done ONCE, not per forward call)
# ----------------------------------------------------------------------------

def prepare_params(params, n_head):
    """Fold 1/sqrt(d_head) into the Q projection, cast weights to bf16 and
    pre-concatenate the fused QKV projection weight."""
    d_model = params["wq"].shape[0]
    scale = 1.0 / math.sqrt(d_model // n_head)

    wq = (params["wq"] * scale).astype(jnp.bfloat16)
    bq = (params["bq"] * scale).astype(jnp.float32)
    wk = params["wk"].astype(jnp.bfloat16)
    bk = params["bk"].astype(jnp.float32)
    wv = params["wv"].astype(jnp.bfloat16)
    bv = params["bv"].astype(jnp.float32)

    return dict(
        w_qkv=jnp.concatenate([wq, wk, wv], axis=1),
        b_qkv=jnp.concatenate([bq, bk, bv]),
        wq=wq, bq=bq, wk=wk, bk=bk, wv=wv, bv=bv,
        wo=params["wo"].astype(jnp.bfloat16),
        bo=params["bo"].astype(jnp.float32),
    )


# ----------------------------------------------------------------------------
# multi_head_attention forward (matches the PyTorch module semantics)
# ----------------------------------------------------------------------------

def multi_head_attention_fwd(prep, q, k, v, mask=None, *, n_head):
    B, Sq, d_model = q.shape
    d_head = d_model // n_head

    if (q is k) and (k is v):
        # Self-attention: fused [D, 3D] projection -> one pallas_call, then a
        # single reshape/transpose into the per-head [B, H, S, dh] layout.
        qkv = linear(q, prep["w_qkv"], prep["b_qkv"], out_dtype=jnp.bfloat16)
        qkv = qkv.reshape(B, Sq, 3, n_head, d_head)
        qkv = jnp.transpose(qkv, (2, 0, 3, 1, 4))          # [3, B, H, S, dh]
        qh, kh, vh = qkv[0], qkv[1], qkv[2]
    else:
        Sk = k.shape[1]
        qh = linear(q, prep["wq"], prep["bq"], out_dtype=jnp.bfloat16)
        kh = linear(k, prep["wk"], prep["bk"], out_dtype=jnp.bfloat16)
        vh = linear(v, prep["wv"], prep["bv"], out_dtype=jnp.bfloat16)
        qh = qh.reshape(B, Sq, n_head, d_head).transpose(0, 2, 1, 3)
        kh = kh.reshape(B, Sk, n_head, d_head).transpose(0, 2, 1, 3)
        vh = vh.reshape(B, Sk, n_head, d_head).transpose(0, 2, 1, 3)

    attn = flash_attention(qh, kh, vh, mask)               # [B, H, Sq, dh] bf16
    attn = attn.transpose(0, 2, 1, 3).reshape(B, Sq, d_model)
    return linear(attn, prep["wo"], prep["bo"], out_dtype=jnp.float32)


# ----------------------------------------------------------------------------
# Deterministic parameter init (weights stored [in, out], i.e. x @ W + b)
# ----------------------------------------------------------------------------

def _init_linear(key, d_in, d_out):
    kw, kb = jax.random.split(key)
    w = jax.random.normal(kw, (d_in, d_out), jnp.float32) * (1.0 / math.sqrt(d_in))
    b = jax.random.normal(kb, (d_out,), jnp.float32) * 0.01
    return w, b


def init_mha_params(key, d_model):
    ks = jax.random.split(key, 4)
    wq, bq = _init_linear(ks[0], d_model, d_model)
    wk, bk = _init_linear(ks[1], d_model, d_model)
    wv, bv = _init_linear(ks[2], d_model, d_model)
    wo, bo = _init_linear(ks[3], d_model, d_model)
    return dict(wq=wq, bq=bq, wk=wk, bk=bk, wv=wv, bv=bv, wo=wo, bo=bo)


# ----------------------------------------------------------------------------
# Main
# ----------------------------------------------------------------------------

if __name__ == "__main__":
    B, S, D_MODEL, N_HEAD = 2, 8, 32, 4

    key = jax.random.PRNGKey(0)
    k_par, k_x = jax.random.split(key)

    params = init_mha_params(k_par, D_MODEL)
    prep = prepare_params(params, N_HEAD)             # once, outside the step
    x = jax.random.normal(k_x, (B, S, D_MODEL), jnp.float32)
    mask = jnp.tril(jnp.ones((S, S), jnp.float32))    # causal mask, [Sq, Sk]

    fwd = jax.jit(
        lambda p, xx, m: multi_head_attention_fwd(p, xx, xx, xx, m,
                                                  n_head=N_HEAD))

    out = fwd(prep, x, mask)
    jax.block_until_ready(out)

    assert out.shape == (B, S, D_MODEL), out.shape
    assert bool(jnp.all(jnp.isfinite(out)))
    print("KERNEL_OK")
</pallas_src>

<mosaic_0001>
module attributes {stable_mosaic.version = 11 : i64} {
  func.func @_linear_kernel(%arg0: i32, %arg1: i32, %arg2: i32, %arg3: memref<16x32xbf16, #tpu.memory_space<vmem>>, %arg4: memref<32x96xbf16, #tpu.memory_space<vmem>>, %arg5: memref<1x96xf32, #tpu.memory_space<vmem>>, %arg6: memref<16x96xbf16, #tpu.memory_space<vmem>>, %arg7: memref<16x96xf32, #tpu.memory_space<vmem>>) attributes {dimension_semantics = [#tpu.dimension_semantics<parallel>, #tpu.dimension_semantics<parallel>, #tpu.dimension_semantics<arbitrary>], iteration_bounds = array<i64: 1, 1, 1>, scalar_prefetch = 0 : i64, scratch_operands = 1 : i64, tpu.core_type = #tpu.core_type<tc>, window_params = [{transform_indices = @transform_0, window_bounds = array<i64: 16, 32>}, {transform_indices = @transform_1, window_bounds = array<i64: 32, 96>}, {transform_indices = @transform_2, window_bounds = array<i64: 1, 96>}, {transform_indices = @transform_3, window_bounds = array<i64: 16, 96>}]} {
    %c0_i32 = arith.constant 0 : i32
    %0 = arith.cmpi eq, %arg2, %c0_i32 : i32
    %1 = arith.extui %0 : i1 to i32
    %c0_i32_0 = arith.constant 0 : i32
    %2 = arith.cmpi ne, %1, %c0_i32_0 : i32
    scf.if %2 {
      %cst_10 = arith.constant 0.000000e+00 : f32
      %12 = vector.broadcast %cst_10 : f32 to vector<16x96xf32>
      %c0_11 = arith.constant 0 : index
      %c0_12 = arith.constant 0 : index
      %13 = vector.load %arg7[%c0_11, %c0_12] : memref<16x96xf32, #tpu.memory_space<vmem>>, vector<16x96xf32>
      tpu.vector_store %arg7[%c0_11, %c0_12], %12 {strides = array<i32>} : memref<16x96xf32, #tpu.memory_space<vmem>>, vector<16x96xf32>,
    } else {
    }
    %c0 = arith.constant 0 : index
    %c0_1 = arith.constant 0 : index
    %3 = vector.load %arg7[%c0, %c0_1] : memref<16x96xf32, #tpu.memory_space<vmem>>, vector<16x96xf32>
    %c0_2 = arith.constant 0 : index
    %c0_3 = arith.constant 0 : index
    %4 = vector.load %arg3[%c0_2, %c0_3] : memref<16x32xbf16, #tpu.memory_space<vmem>>, vector<16x32xbf16>
    %c0_4 = arith.constant 0 : index
    %c0_5 = arith.constant 0 : index
    %5 = vector.load %arg4[%c0_4, %c0_5] : memref<32x96xbf16, #tpu.memory_space<vmem>>, vector<32x96xbf16>
    %cst = arith.constant dense<0.000000e+00> : vector<16x96xf32>
    %6 = tpu.matmul %4, %5, %cst {dimension_numbers = #tpu.dot_dimension_numbers<[1], [0], [0], [1], [0, 0, 1, 1], [], []>} : vector<16x32xbf16>, vector<32x96xbf16>, vector<16x96xf32> -> vector<16x96xf32>
    %7 = arith.addf %3, %6 : vector<16x96xf32>
    %c0_6 = arith.constant 0 : index
    %c0_7 = arith.constant 0 : index
    %8 = vector.load %arg7[%c0_6, %c0_7] : memref<16x96xf32, #tpu.memory_space<vmem>>, vector<16x96xf32>
    tpu.vector_store %arg7[%c0_6, %c0_7], %7 {strides = array<i32>} : memref<16x96xf32, #tpu.memory_space<vmem>>, vector<16x96xf32>,
    %c0_i32_8 = arith.constant 0 : i32
    %9 = arith.cmpi eq, %arg2, %c0_i32_8 : i32
    %10 = arith.extui %9 : i1 to i32
    %c0_i32_9 = arith.constant 0 : i32
    %11 = arith.cmpi ne, %10, %c0_i32_9 : i32
    scf.if %11 {
      %c0_10 = arith.constant 0 : index
      %c0_11 = arith.constant 0 : index
      %12 = vector.load %arg7[%c0_10, %c0_11] : memref<16x96xf32, #tpu.memory_space<vmem>>, vector<16x96xf32>
      %c0_12 = arith.constant 0 : index
      %c0_13 = arith.constant 0 : index
      %13 = vector.load %arg5[%c0_12, %c0_13] : memref<1x96xf32, #tpu.memory_space<vmem>>, vector<1x96xf32>
      %14 = vector.broadcast %13 : vector<1x96xf32> to vector<16x96xf32>
      %15 = arith.addf %12, %14 : vector<16x96xf32>
      %16 = arith.truncf %15 : vector<16x96xf32> to vector<16x96xbf16>
      %c0_14 = arith.constant 0 : index
      %c0_15 = arith.constant 0 : index
      %17 = vector.load %arg6[%c0_14, %c0_15] : memref<16x96xbf16, #tpu.memory_space<vmem>>, vector<16x96xbf16>
      tpu.vector_store %arg6[%c0_14, %c0_15], %16 {strides = array<i32>} : memref<16x96xbf16, #tpu.memory_space<vmem>>, vector<16x96xbf16>,
    } else {
    }
    return
  }
  func.func @transform_0(%arg0: i32, %arg1: i32, %arg2: i32) -> (i32, i32) {
    %c0_i32 = arith.constant 0 : i32
    return %arg0, %arg2 : i32, i32
  }
  func.func @transform_1(%arg0: i32, %arg1: i32, %arg2: i32) -> (i32, i32) {
    %c0_i32 = arith.constant 0 : i32
    return %arg2, %arg1 : i32, i32
  }
  func.func @transform_2(%arg0: i32, %arg1: i32, %arg2: i32) -> (i32, i32) {
    %c0_i32 = arith.constant 0 : i32
    %c0_i32_0 = arith.constant 0 : i32
    return %c0_i32, %arg1 : i32, i32
  }
  func.func @transform_3(%arg0: i32, %arg1: i32, %arg2: i32) -> (i32, i32) {
    %c0_i32 = arith.constant 0 : i32
    return %arg0, %arg1 : i32, i32
  }
}

module attributes {stable_mosaic.version = 11 : i64} {
  func.func @_flash_attn_kernel(%arg0: i32, %arg1: i32, %arg2: i32, %arg3: i32, %arg4: memref<1x1x8x8xbf16, #tpu.memory_space<vmem>>, %arg5: memref<1x1x8x8xbf16, #tpu.memory_space<vmem>>, %arg6: memref<1x1x8x8xbf16, #tpu.memory_space<vmem>>, %arg7: memref<8x8xbf16, #tpu.memory_space<vmem>>, %arg8: memref<1x1x8x8xbf16, #tpu.memory_space<vmem>>, %arg9: memref<8x1xf32, #tpu.memory_space<vmem>>, %arg10: memref<8x1xf32, #tpu.memory_space<vmem>>, %arg11: memref<8x8xf32, #tpu.memory_space<vmem>>) attributes {dimension_semantics = [#tpu.dimension_semantics<parallel>, #tpu.dimension_semantics<parallel>, #tpu.dimension_semantics<parallel>, #tpu.dimension_semantics<arbitrary>], iteration_bounds = array<i64: 2, 4, 1, 1>, scalar_prefetch = 0 : i64, scratch_operands = 3 : i64, tpu.core_type = #tpu.core_type<tc>, window_params = [{transform_indices = @transform_0, window_bounds = array<i64: 1, 1, 8, 8>}, {transform_indices = @transform_1, window_bounds = array<i64: 1, 1, 8, 8>}, {transform_indices = @transform_2, window_bounds = array<i64: 1, 1, 8, 8>}, {transform_indices = @transform_3, window_bounds = array<i64: 8, 8>}, {transform_indices = @transform_4, window_bounds = array<i64: 1, 1, 8, 8>}]} {
    %c0_i32 = arith.constant 0 : i32
    %0 = arith.cmpi eq, %arg3, %c0_i32 : i32
    %1 = arith.extui %0 : i1 to i32
    %c0_i32_0 = arith.constant 0 : i32
    %2 = arith.cmpi ne, %1, %c0_i32_0 : i32
    scf.if %2 {
      %cst_31 = arith.constant 0xFF800000 : f32
      %39 = vector.broadcast %cst_31 : f32 to vector<8x1xf32>
      %c0_32 = arith.constant 0 : index
      %c0_33 = arith.constant 0 : index
      %40 = vector.load %arg9[%c0_32, %c0_33] : memref<8x1xf32, #tpu.memory_space<vmem>>, vector<8x1xf32>
      tpu.vector_store %arg9[%c0_32, %c0_33], %39 {strides = array<i32>} : memref<8x1xf32, #tpu.memory_space<vmem>>, vector<8x1xf32>,
      %cst_34 = arith.constant 0.000000e+00 : f32
      %41 = vector.broadcast %cst_34 : f32 to vector<8x1xf32>
      %c0_35 = arith.constant 0 : index
      %c0_36 = arith.constant 0 : index
      %42 = vector.load %arg10[%c0_35, %c0_36] : memref<8x1xf32, #tpu.memory_space<vmem>>, vector<8x1xf32>
      tpu.vector_store %arg10[%c0_35, %c0_36], %41 {strides = array<i32>} : memref<8x1xf32, #tpu.memory_space<vmem>>, vector<8x1xf32>,
      %cst_37 = arith.constant 0.000000e+00 : f32
      %43 = vector.broadcast %cst_37 : f32 to vector<8x8xf32>
      %c0_38 = arith.constant 0 : index
      %c0_39 = arith.constant 0 : index
      %44 = vector.load %arg11[%c0_38, %c0_39] : memref<8x8xf32, #tpu.memory_space<vmem>>, vector<8x8xf32>
      tpu.vector_store %arg11[%c0_38, %c0_39], %43 {strides = array<i32>} : memref<8x8xf32, #tpu.memory_space<vmem>>, vector<8x8xf32>,
    } else {
    }
    %c0 = arith.constant 0 : index
    %c0_1 = arith.constant 0 : index
    %c0_2 = arith.constant 0 : index
    %c0_3 = arith.constant 0 : index
    %3 = vector.load %arg4[%c0, %c0_1, %c0_2, %c0_3] : memref<1x1x8x8xbf16, #tpu.memory_space<vmem>>, vector<1x1x8x8xbf16>
    %4 = vector.shape_cast %3 : vector<1x1x8x8xbf16> to vector<8x8xbf16>
    %c0_4 = arith.constant 0 : index
    %c0_5 = arith.constant 0 : index
    %c0_6 = arith.constant 0 : index
    %c0_7 = arith.constant 0 : index
    %5 = vector.load %arg5[%c0_4, %c0_5, %c0_6, %c0_7] : memref<1x1x8x8xbf16, #tpu.memory_space<vmem>>, vector<1x1x8x8xbf16>
    %6 = vector.shape_cast %5 : vector<1x1x8x8xbf16> to vector<8x8xbf16>
    %c0_8 = arith.constant 0 : index
    %c0_9 = arith.constant 0 : index
    %c0_10 = arith.constant 0 : index
    %c0_11 = arith.constant 0 : index
    %7 = vector.load %arg6[%c0_8, %c0_9, %c0_10, %c0_11] : memref<1x1x8x8xbf16, #tpu.memory_space<vmem>>, vector<1x1x8x8xbf16>
    %8 = vector.shape_cast %7 : vector<1x1x8x8xbf16> to vector<8x8xbf16>
    %cst = arith.constant dense<0.000000e+00> : vector<8x8xf32>
    %9 = tpu.matmul %4, %6, %cst {dimension_numbers = #tpu.dot_dimension_numbers<[1], [1], [0], [0], [0, 0, 1, 0], [], []>} : vector<8x8xbf16>, vector<8x8xbf16>, vector<8x8xf32> -> vector<8x8xf32>
    %c0_12 = arith.constant 0 : index
    %c0_13 = arith.constant 0 : index
    %10 = vector.load %arg7[%c0_12, %c0_13] : memref<8x8xbf16, #tpu.memory_space<vmem>>, vector<8x8xbf16>
    %11 = arith.extf %10 : vector<8x8xbf16> to vector<8x8xf32>
    %12 = arith.addf %9, %11 : vector<8x8xf32>
    %c0_14 = arith.constant 0 : index
    %c0_15 = arith.constant 0 : index
    %13 = vector.load %arg9[%c0_14, %c0_15] : memref<8x1xf32, #tpu.memory_space<vmem>>, vector<8x1xf32>
    %cst_16 = arith.constant dense<0xFF800000> : vector<8xf32>
    %14 = vector.multi_reduction <maximumf>, %12, %cst_16 [1] : vector<8x8xf32> to vector<8xf32>
    %15 = vector.shape_cast %14 : vector<8xf32> to vector<8x1xf32>
    %16 = arith.maximumf %13, %15 : vector<8x1xf32>
    %17 = arith.subf %13, %16 : vector<8x1xf32>
    %18 = math.exp %17 : vector<8x1xf32>
    %19 = vector.broadcast %16 : vector<8x1xf32> to vector<8x8xf32>
    %20 = arith.subf %12, %19 : vector<8x8xf32>
    %21 = math.exp %20 : vector<8x8xf32>
    %c0_17 = arith.constant 0 : index
    %c0_18 = arith.constant 0 : index
    %22 = vector.load %arg10[%c0_17, %c0_18] : memref<8x1xf32, #tpu.memory_space<vmem>>, vector<8x1xf32>
    %23 = arith.mulf %18, %22 : vector<8x1xf32>
    %cst_19 = arith.constant dense<0.000000e+00> : vector<8xf32>
    %24 = vector.multi_reduction <add>, %21, %cst_19 [1] : vector<8x8xf32> to vector<8xf32>
    %25 = vector.shape_cast %24 : vector<8xf32> to vector<8x1xf32>
    %26 = arith.addf %23, %25 : vector<8x1xf32>
    %c0_20 = arith.constant 0 : index
    %c0_21 = arith.constant 0 : index
    %27 = vector.load %arg10[%c0_20, %c0_21] : memref<8x1xf32, #tpu.memory_space<vmem>>, vector<8x1xf32>
    tpu.vector_store %arg10[%c0_20, %c0_21], %26 {strides = array<i32>} : memref<8x1xf32, #tpu.memory_space<vmem>>, vector<8x1xf32>,
    %c0_22 = arith.constant 0 : index
    %c0_23 = arith.constant 0 : index
    %28 = vector.load %arg11[%c0_22, %c0_23] : memref<8x8xf32, #tpu.memory_space<vmem>>, vector<8x8xf32>
    %29 = vector.broadcast %18 : vector<8x1xf32> to vector<8x8xf32>
    %30 = arith.mulf %29, %28 : vector<8x8xf32>
    %31 = arith.truncf %21 : vector<8x8xf32> to vector<8x8xbf16>
    %cst_24 = arith.constant dense<0.000000e+00> : vector<8x8xf32>
    %32 = tpu.matmul %31, %8, %cst_24 {dimension_numbers = #tpu.dot_dimension_numbers<[1], [0], [0], [1], [0, 0, 1, 1], [], []>} : vector<8x8xbf16>, vector<8x8xbf16>, vector<8x8xf32> -> vector<8x8xf32>
    %33 = arith.addf %30, %32 : vector<8x8xf32>
    %c0_25 = arith.constant 0 : index
    %c0_26 = arith.constant 0 : index
    %34 = vector.load %arg11[%c0_25, %c0_26] : memref<8x8xf32, #tpu.memory_space<vmem>>, vector<8x8xf32>
    tpu.vector_store %arg11[%c0_25, %c0_26], %33 {strides = array<i32>} : memref<8x8xf32, #tpu.memory_space<vmem>>, vector<8x8xf32>,
    %c0_27 = arith.constant 0 : index
    %c0_28 = arith.constant 0 : index
    %35 = vector.load %arg9[%c0_27, %c0_28] : memref<8x1xf32, #tpu.memory_space<vmem>>, vector<8x1xf32>
    tpu.vector_store %arg9[%c0_27, %c0_28], %16 {strides = array<i32>} : memref<8x1xf32, #tpu.memory_space<vmem>>, vector<8x1xf32>,
    %c0_i32_29 = arith.constant 0 : i32
    %36 = arith.cmpi eq, %arg3, %c0_i32_29 : i32
    %37 = arith.extui %36 : i1 to i32
    %c0_i32_30 = arith.constant 0 : i32
    %38 = arith.cmpi ne, %37, %c0_i32_30 : i32
    scf.if %38 {
      %c0_31 = arith.constant 0 : index
      %c0_32 = arith.constant 0 : index
      %39 = vector.load %arg10[%c0_31, %c0_32] : memref<8x1xf32, #tpu.memory_space<vmem>>, vector<8x1xf32>
      %40 = tpu.reciprocal %39 : vector<8x1xf32> -> vector<8x1xf32>
      %c0_33 = arith.constant 0 : index
      %c0_34 = arith.constant 0 : index
      %41 = vector.load %arg11[%c0_33, %c0_34] : memref<8x8xf32, #tpu.memory_space<vmem>>, vector<8x8xf32>
      %42 = vector.broadcast %40 : vector<8x1xf32> to vector<8x8xf32>
      %43 = arith.mulf %41, %42 : vector<8x8xf32>
      %44 = arith.truncf %43 : vector<8x8xf32> to vector<8x8xbf16>
      %c0_35 = arith.constant 0 : index
      %c0_36 = arith.constant 0 : index
      %c0_37 = arith.constant 0 : index
      %c0_38 = arith.constant 0 : index
      %45 = vector.load %arg8[%c0_35, %c0_36, %c0_37, %c0_38] : memref<1x1x8x8xbf16, #tpu.memory_space<vmem>>, vector<1x1x8x8xbf16>
      %46 = vector.shape_cast %45 : vector<1x1x8x8xbf16> to vector<8x8xbf16>
      %47 = vector.shape_cast %44 : vector<8x8xbf16> to vector<1x1x8x8xbf16>
      tpu.vector_store %arg8[%c0_35, %c0_36, %c0_37, %c0_38], %47 {strides = array<i32>} : memref<1x1x8x8xbf16, #tpu.memory_space<vmem>>, vector<1x1x8x8xbf16>,
    } else {
    }
    return
  }
  func.func @transform_0(%arg0: i32, %arg1: i32, %arg2: i32, %arg3: i32) -> (i32, i32, i32, i32) {
    %c0_i32 = arith.constant 0 : i32
    %c0_i32_0 = arith.constant 0 : i32
    return %arg0, %arg1, %arg2, %c0_i32 : i32, i32, i32, i32
  }
  func.func @transform_1(%arg0: i32, %arg1: i32, %arg2: i32, %arg3: i32) -> (i32, i32, i32, i32) {
    %c0_i32 = arith.constant 0 : i32
    %c0_i32_0 = arith.constant 0 : i32
    return %arg0, %arg1, %arg3, %c0_i32 : i32, i32, i32, i32
  }
  func.func @transform_2(%arg0: i32, %arg1: i32, %arg2: i32, %arg3: i32) -> (i32, i32, i32, i32) {
    %c0_i32 = arith.constant 0 : i32
    %c0_i32_0 = arith.constant 0 : i32
    return %arg0, %arg1, %arg3, %c0_i32 : i32, i32, i32, i32
  }
  func.func @transform_3(%arg0: i32, %arg1: i32, %arg2: i32, %arg3: i32) -> (i32, i32) {
    %c0_i32 = arith.constant 0 : i32
    return %arg2, %arg3 : i32, i32
  }
  func.func @transform_4(%arg0: i32, %arg1: i32, %arg2: i32, %arg3: i32) -> (i32, i32, i32, i32) {
    %c0_i32 = arith.constant 0 : i32
    %c0_i32_0 = arith.constant 0 : i32
    return %arg0, %arg1, %arg2, %c0_i32 : i32, i32, i32, i32
  }
}

module attributes {stable_mosaic.version = 11 : i64} {
  func.func @_linear_kernel(%arg0: i32, %arg1: i32, %arg2: i32, %arg3: memref<16x32xbf16, #tpu.memory_space<vmem>>, %arg4: memref<32x32xbf16, #tpu.memory_space<vmem>>, %arg5: memref<1x32xf32, #tpu.memory_space<vmem>>, %arg6: memref<16x32xf32, #tpu.memory_space<vmem>>, %arg7: memref<16x32xf32, #tpu.memory_space<vmem>>) attributes {dimension_semantics = [#tpu.dimension_semantics<parallel>, #tpu.dimension_semantics<parallel>, #tpu.dimension_semantics<arbitrary>], iteration_bounds = array<i64: 1, 1, 1>, scalar_prefetch = 0 : i64, scratch_operands = 1 : i64, tpu.core_type = #tpu.core_type<tc>, window_params = [{transform_indices = @transform_0, window_bounds = array<i64: 16, 32>}, {transform_indices = @transform_1, window_bounds = array<i64: 32, 32>}, {transform_indices = @transform_2, window_bounds = array<i64: 1, 32>}, {transform_indices = @transform_3, window_bounds = array<i64: 16, 32>}]} {
    %c0_i32 = arith.constant 0 : i32
    %0 = arith.cmpi eq, %arg2, %c0_i32 : i32
    %1 = arith.extui %0 : i1 to i32
    %c0_i32_0 = arith.constant 0 : i32
    %2 = arith.cmpi ne, %1, %c0_i32_0 : i32
    scf.if %2 {
      %cst_10 = arith.constant 0.000000e+00 : f32
      %12 = vector.broadcast %cst_10 : f32 to vector<16x32xf32>
      %c0_11 = arith.constant 0 : index
      %c0_12 = arith.constant 0 : index
      %13 = vector.load %arg7[%c0_11, %c0_12] : memref<16x32xf32, #tpu.memory_space<vmem>>, vector<16x32xf32>
      tpu.vector_store %arg7[%c0_11, %c0_12], %12 {strides = array<i32>} : memref<16x32xf32, #tpu.memory_space<vmem>>, vector<16x32xf32>,
    } else {
    }
    %c0 = arith.constant 0 : index
    %c0_1 = arith.constant 0 : index
    %3 = vector.load %arg7[%c0, %c0_1] : memref<16x32xf32, #tpu.memory_space<vmem>>, vector<16x32xf32>
    %c0_2 = arith.constant 0 : index
    %c0_3 = arith.constant 0 : index
    %4 = vector.load %arg3[%c0_2, %c0_3] : memref<16x32xbf16, #tpu.memory_space<vmem>>, vector<16x32xbf16>
    %c0_4 = arith.constant 0 : index
    %c0_5 = arith.constant 0 : index
    %5 = vector.load %arg4[%c0_4, %c0_5] : memref<32x32xbf16, #tpu.memory_space<vmem>>, vector<32x32xbf16>
    %cst = arith.constant dense<0.000000e+00> : vector<16x32xf32>
    %6 = tpu.matmul %4, %5, %cst {dimension_numbers = #tpu.dot_dimension_numbers<[1], [0], [0], [1], [0, 0, 1, 1], [], []>} : vector<16x32xbf16>, vector<32x32xbf16>, vector<16x32xf32> -> vector<16x32xf32>
    %7 = arith.addf %3, %6 : vector<16x32xf32>
    %c0_6 = arith.constant 0 : index
    %c0_7 = arith.constant 0 : index
    %8 = vector.load %arg7[%c0_6, %c0_7] : memref<16x32xf32, #tpu.memory_space<vmem>>, vector<16x32xf32>
    tpu.vector_store %arg7[%c0_6, %c0_7], %7 {strides = array<i32>} : memref<16x32xf32, #tpu.memory_space<vmem>>, vector<16x32xf32>,
    %c0_i32_8 = arith.constant 0 : i32
    %9 = arith.cmpi eq, %arg2, %c0_i32_8 : i32
    %10 = arith.extui %9 : i1 to i32
    %c0_i32_9 = arith.constant 0 : i32
    %11 = arith.cmpi ne, %10, %c0_i32_9 : i32
    scf.if %11 {
      %c0_10 = arith.constant 0 : index
      %c0_11 = arith.constant 0 : index
      %12 = vector.load %arg7[%c0_10, %c0_11] : memref<16x32xf32, #tpu.memory_space<vmem>>, vector<16x32xf32>
      %c0_12 = arith.constant 0 : index
      %c0_13 = arith.constant 0 : index
      %13 = vector.load %arg5[%c0_12, %c0_13] : memref<1x32xf32, #tpu.memory_space<vmem>>, vector<1x32xf32>
      %14 = vector.broadcast %13 : vector<1x32xf32> to vector<16x32xf32>
      %15 = arith.addf %12, %14 : vector<16x32xf32>
      %c0_14 = arith.constant 0 : index
      %c0_15 = arith.constant 0 : index
      %16 = vector.load %arg6[%c0_14, %c0_15] : memref<16x32xf32, #tpu.memory_space<vmem>>, vector<16x32xf32>
      tpu.vector_store %arg6[%c0_14, %c0_15], %15 {strides = array<i32>} : memref<16x32xf32, #tpu.memory_space<vmem>>, vector<16x32xf32>,
    } else {
    }
    return
  }
  func.func @transform_0(%arg0: i32, %arg1: i32, %arg2: i32) -> (i32, i32) {
    %c0_i32 = arith.constant 0 : i32
    return %arg0, %arg2 : i32, i32
  }
  func.func @transform_1(%arg0: i32, %arg1: i32, %arg2: i32) -> (i32, i32) {
    %c0_i32 = arith.constant 0 : i32
    return %arg2, %arg1 : i32, i32
  }
  func.func @transform_2(%arg0: i32, %arg1: i32, %arg2: i32) -> (i32, i32) {
    %c0_i32 = arith.constant 0 : i32
    %c0_i32_0 = arith.constant 0 : i32
    return %c0_i32, %arg1 : i32, i32
  }
  func.func @transform_3(%arg0: i32, %arg1: i32, %arg2: i32) -> (i32, i32) {
    %c0_i32 = arith.constant 0 : i32
    return %arg0, %arg1 : i32, i32
  }
}

</mosaic_0001>

<llo_original>
// kernel: _lambda_.3
$region0: #{_lambda_.3}
  #allocation0 [shape = 'u32[]', space=smem, size = 0x4, offset = 0x4, fixed_abs, tag = 'smem constant byte address 0x4 - core index']
  #allocation1 [shape = 'u32[144,128]{1,0:T(1,128)}', space=vmem, size = 0x12000, scoped, tag = 'internal scratch']
  #allocation2 [shape = 'f32[16,96]{1,0:T(8,128)}', space=vmem, size = 0x2000, scoped, tag = 'scratch operand']
  %s0 = inlined_call_operand.vmem [shape: bf16[16,32], index: 0, kind: input, shape index: {}]
  %s1 = inlined_call_operand.vmem [shape: bf16[32,96], index: 1, kind: input, shape index: {}]
  %s2 = inlined_call_operand.vmem [shape: f32[1,96], index: 2, kind: input, shape index: {}]
  %s3 = inlined_call_operand.vmem [shape: bf16[16,96], index: 3, kind: output, shape index: {}]
  %s4 = sld [smem:[#allocation0]]
  $region30: #{_lambda_.3} parent=0
    _
  %s6 = ssub.s32 1, %s4
  %s7 = scalar_select 0, %s6, %s4
  // Predicated region
  $region2: #{_lambda_.3} parent=0 // pred_check
    _
  $region3: #{_lambda_.3} parent=0 // pred_check_branch
    %9 = sbr.rel (0) target = $region5
  $region4: #{_lambda_.3} parent=0 // pred_region
    _
  $region5: #{_lambda_.3} parent=0 // pred_fallthru
    _
  // Predicated region
  $region6: #{_lambda_.3} parent=0 // pred_check
    _
  $region7: #{_lambda_.3} parent=0 // pred_check_branch
    %11 = sbr.rel (0) target = $region9
  $region8: #{_lambda_.3} parent=0 // pred_region
    _
  $region9: #{_lambda_.3} parent=0 // pred_fallthru
    _
  // Predicated region
  $region10: #{_lambda_.3} parent=0 // pred_check
    _
  $region11: #{_lambda_.3} parent=0 // pred_check_branch
    %13 = sbr.rel (0) target = $region13
  $region12: #{_lambda_.3} parent=0 // pred_region
    _
  $region13: #{_lambda_.3} parent=0 // pred_fallthru
    _
  %p15 = scmp.eq.s32.totalorder 0, 0
  // Predicated region
  $region14: #{_lambda_.3} parent=0 // pred_check
    %p16 = pneg %p15
  $region15: #{_lambda_.3} parent=0 // pred_check_branch
    %18 = sbr.rel (%p16) target = $region17
  $region16: #{_lambda_.3} parent=0 // pred_region
    %vm19 = vcmask 785408
    %20 = vst.msk [vmem:[#allocation2] sm:$0xff] %vm19, 0.0
    %21 = vst.msk [vmem:[#allocation2 + $0x8] sm:$0xff] %vm19, 0.0
  $region17: #{_lambda_.3} parent=0 // pred_fallthru
    _
  %v22 = vld [vmem:[#allocation2] sm:$0xff]
  %v23 = vld [vmem:[#allocation2 + $0x8] sm:$0xff]
  %v24 = vld [vmem:[%s0] sm:$0xf]
  %v25 = vld [vmem:[%s0 + $0x4] sm:$0xf]
  %v26 = vld [vmem:[%s1] sm:$0xf]
  %v27 = vld [vmem:[%s1 + $0x4] sm:$0xf]
  %v28 = vld [vmem:[%s1 + $0x8] sm:$0xf]
  %v29 = vld [vmem:[%s1 + $0xc] sm:$0xf]
  %v32 = vunpack.c.l.b16 %v24
  %v33 = vunpack.c.l.b16 %v25
  %v34 = vpack.c.b16 %v33, %v32
  %v39 = vunpack.c.l.b16 %v26
  %v40 = vunpack.c.l.b16 %v27
  %v41 = vunpack.c.l.b16 %v28
  %v42 = vunpack.c.l.b16 %v29
  %v43 = vpack.c.b16 %v40, %v39
  %v44 = vpack.c.b16 %v42, %v41
  %vm47 = vcmask 261120
  %v49 = vsel %vm47, %v34, 0
  %51 = vmatprep.subr.bf16.mxu0 0
  %52 = vmatpush1.bf16.msra.mxu0 %v43
  %53 = vmatprep.subr.bf16.mxu0 0
  %54 = vmatpush1.bf16.msra.mxu0 %v44
  %55 = vmatprep.subr.bf16.mxu0 0
  %56 = vmatpush1.bf16.msra.mxu0 0
  %57 = vmatprep.subr.bf16.mxu0 0
  %58 = vmatpush1.bf16.msra.mxu0 0
  %59 = vmatprep.subr.bf16.mxu0 0
  %60 = vmatpush1.bf16.msra.mxu0 0
  %61 = vmatprep.subr.bf16.mxu0 0
  %62 = vmatpush1.bf16.msra.mxu0 0
  %63 = vmatprep.subr.bf16.mxu0 0
  %64 = vmatpush1.bf16.msra.mxu0 0
  %65 = vmatprep.subr.bf16.mxu0 0
  %66 = vmatpush1.bf16.msra.mxu0 0
  %67 = vmatprep.subr.bf16.mxu0 0
  %68 = vmatpush1.bf16.msra.mxu0 0
  %69 = vmatprep.subr.bf16.mxu0 0
  %70 = vmatpush1.bf16.msra.mxu0 0
  %71 = vmatprep.subr.bf16.mxu0 0
  %72 = vmatpush1.bf16.msra.mxu0 0
  %73 = vmatprep.subr.bf16.mxu0 0
  %74 = vmatpush1.bf16.msra.mxu0 0
  %75 = vmatprep.subr.bf16.mxu0 0
  %76 = vmatpush1.bf16.msra.mxu0 0
  %77 = vmatprep.subr.bf16.mxu0 0
  %78 = vmatpush1.bf16.msra.mxu0 0
  %79 = vmatprep.subr.bf16.mxu0 0
  %80 = vmatpush1.bf16.msra.mxu0 0
  %81 = vmatprep.subr.bf16.mxu0 0
  %82 = vmatpush1.bf16.msra.mxu0 0
  %83 = vmatprep.mubr.bf16.mxu0 0
  %84 = vmatmul.mubr.bf16.gmra.mrb[0].mxu0 %v49
  %v85 = vpop.f32.mrb[0].mxu0
  %v86 = vadd.f32 0.0, %v85
  %v87 = vpop.f32.mrb[0].mxu0
  %v88 = vpop.f32.mrb[0].mxu0
  %v89 = vadd.f32 0.0, %v88
  %v90 = vpop.f32.mrb[0].mxu0
  %91 = vdwg.mxu0
  %v92 = vadd.f32 %v22, %v86
  %v93 = vadd.f32 %v23, %v89
  %vm94 = vcmask 785408
  %95 = vst.msk [vmem:[#allocation2] sm:$0xff] %vm94, %v92
  %96 = vst.msk [vmem:[#allocation2 + $0x8] sm:$0xff] %vm94, %v93
  // Predicated region
  $region18: #{_lambda_.3} parent=0 // pred_check
    %p97 = pneg %p15
  $region19: #{_lambda_.3} parent=0 // pred_check_branch
    %99 = sbr.rel (%p97) target = $region21
  $region20: #{_lambda_.3} parent=0 // pred_region
    %v100 = vld [vmem:[#allocation2] sm:$0xff]
    %v101 = vld [vmem:[#allocation2 + $0x8] sm:$0xff]
    %v102 = vld [vmem:[%s2] sm:$0x1]
    %v104 = vlaneseq
    %v105 = vshrl.u32 %v104, 7
    %v106 = vsub.s32 0, %v105
    %v107 = vrot.slane %v102, %v106
    %v109 = vadd.f32 %v100, %v107
    %v110 = vadd.f32 %v101, %v107
    %v111 = vpack.c.bf16 %v110, %v109
    %v113 = vunpack.c.l.b16 %v111
    %v114 = vunpack.c.h.b16 %v111
    %v115 = vpack.c.b16 %v113, %v113
    %v116 = vpack.c.b16 %v114, %v114
    %vm119 = vcmask 781312
    %120 = vst.msk [vmem:[%s3] sm:$0xf] %vm119, %v115
    %121 = vst.msk [vmem:[%s3 + $0x4] sm:$0xf] %vm119, %v116
  $region21: #{_lambda_.3} parent=0 // pred_fallthru
    _
  // Predicated region
  $region22: #{_lambda_.3} parent=0 // pred_check
    _
  $region23: #{_lambda_.3} parent=0 // pred_check_branch
    %123 = sbr.rel (0) target = $region25
  $region24: #{_lambda_.3} parent=0 // pred_region
    _
  $region25: #{_lambda_.3} parent=0 // pred_fallthru
    _
  // Predicated region
  $region26: #{_lambda_.3} parent=0 // pred_check
    _
  $region27: #{_lambda_.3} parent=0 // pred_check_branch
    %125 = sbr.rel (0) target = $region29
  $region28: #{_lambda_.3} parent=0 // pred_region
    _
  $region29: #{_lambda_.3} parent=0 // pred_fallthru
    _

// kernel: _lambda_.4
$region0: #{_lambda_.4}
  #allocation0 [shape = 'u32[]', space=smem, size = 0x4, offset = 0x4, fixed_abs, tag = 'smem constant byte address 0x4 - core index']
  #allocation1 [shape = 'u32[144,128]{1,0:T(1,128)}', space=vmem, size = 0x12000, scoped, tag = 'internal scratch']
  #allocation2 [shape = 'f32[8,1]{1,0:T(8,128)}', space=vmem, size = 0x1000, scoped, tag = 'scratch operand']
  #allocation3 [shape = 'f32[8,1]{1,0:T(8,128)}', space=vmem, size = 0x1000, scoped, tag = 'scratch operand']
  #allocation4 [shape = 'f32[8,8]{1,0:T(8,128)}', space=vmem, size = 0x1000, scoped, tag = 'scratch operand']
  %s0 = inlined_call_operand.vmem [shape: bf16[2,4,8,8], index: 0, kind: input, shape index: {}]
  %s1 = inlined_call_operand.vmem [shape: bf16[2,4,8,8], index: 1, kind: input, shape index: {}]
  %s2 = inlined_call_operand.vmem [shape: bf16[2,4,8,8], index: 2, kind: input, shape index: {}]
  %s3 = inlined_call_operand.vmem [shape: bf16[8,8], index: 3, kind: input, shape index: {}]
  %s4 = inlined_call_operand.vmem [shape: bf16[2,4,8,8], index: 4, kind: output, shape index: {}]
  %s5 = sld [smem:[#allocation0]]
  $region57: #{_lambda_.4} parent=0
    _
  %s7 = ssub.s32 1, %s5
  %s8 = scalar_select 0, %s7, %s5
  loop: start=0, step=1, limit=10
  $region2: #{_lambda_.4} parent=0 // loop_pre_header
    _
  $region3: #{_lambda_.4} parent=0 // loop_header
    %s10 = sphi 0, %s14
    %p11 = scmp.ge.s32.totalorder %s10, 10
    %s17 = sphi 0, %s43
    %s18 = sphi 0, %s39
    %s19 = sphi 0, %s35
    %s20 = sphi 0, %s31
    %s21 = sphi 0, %s17
    %s22 = sphi 0, %s18
    %s23 = sphi 0, %s19
    %s24 = sphi 0, %s20
    %s25 = sphi 0, %s21
    %s26 = sphi 0, %s22
    %s27 = sphi 0, %s23
    %s28 = sphi 0, %s24
    %s50 = sphi 0, %s52
    %s53 = sphi 0, %s50
    %s54 = sphi 0, %s53
    %s70 = sphi 0, %s54
    %s80 = sphi 0, %s82
    %s83 = sphi 0, %s80
    %s84 = sphi 0, %s83
    %s100 = sphi 0, %s84
    %s110 = sphi 0, %s112
    %s113 = sphi 0, %s110
    %s114 = sphi 0, %s113
    %s130 = sphi 0, %s114
    %s138 = sphi 0, %s140
    %s141 = sphi 0, %s138
    %s142 = sphi 0, %s141
    %s158 = sphi 0, %s142
    %s168 = sphi 0, %s170
    %s171 = sphi 0, %s168
    %s172 = sphi 0, %s171
    %s188 = sphi 0, %s172
  $region4: #{_lambda_.4} parent=0 // loop_header_branch
    %13 = sbr.rel (%p11) target = $region8
  $region5: #{_lambda_.4} parent=0 // loop_body
    %s15 = ssub.s32 %s10, 1
    %s16 = ssub.s32 %s10, 2
    %s29 = sadd.s32 1, %s20
    %p30 = scmp.ge.s32.totalorder %s29, 1
    %s31 = scalar_select %p30, 0, %s29
    %s32 = sadd.s32 1, %s19
    %s33 = scalar_select %p30, %s32, %s19
    %p34 = scmp.ge.s32.totalorder %s33, 1
    %s35 = scalar_select %p34, 0, %s33
    %s36 = sadd.s32 1, %s18
    %s37 = scalar_select %p34, %s36, %s18
    %p38 = scmp.ge.s32.totalorder %s37, 4
    %s39 = scalar_select %p38, 0, %s37
    %s40 = sadd.s32 1, %s17
    %s41 = scalar_select %p38, %s40, %s17
    %p42 = scmp.ge.s32.totalorder %s41, 2
    %s43 = scalar_select %p42, 0, %s41
    %s44 = ssub.s32 %s17, %s43
    %s45 = ssub.s32 %s18, %s39
    %s46 = sor.u32 %s44, %s45
    %s47 = ssub.s32 %s19, %s35
    %s48 = sor.u32 %s46, %s47
    %p49 = scmp.eq.s32.totalorder %s48, 0
    %s51 = sadd.s32 %s50, 1
    %s52 = scalar_select %p49, %s50, %s51
    %p55 = pneg %p49
    %p56 = scmp.eq.s32.totalorder %s10, 7
    %p57 = por %p55, %p56
    %p58 = scmp.ne.s32.totalorder %s50, %s53
    %p59 = scmp.eq.s32.totalorder %s10, 0
    %p60 = por %p58, %p59
    %p61 = scmp.ne.s32.totalorder %s50, %s53
    %p62 = scmp.eq.s32.totalorder %s15, 7
    %p63 = por %p61, %p62
    %p64 = scmp.ne.s32.totalorder %s53, %s54
    %p65 = scmp.eq.s32.totalorder %s15, 0
    %p66 = por %p64, %p65
    %p67 = scmp.ne.s32.totalorder %s53, %s54
    %p68 = scmp.eq.s32.totalorder %s16, 7
    %p69 = por %p67, %p68
    %p71 = scmp.ne.s32.totalorder %s54, %s70
    %p72 = scmp.eq.s32.totalorder %s16, 0
    %p73 = por %p71, %p72
    %s74 = ssub.s32 %s17, %s43
    %s75 = ssub.s32 %s18, %s39
    %s76 = sor.u32 %s74, %s75
    %s77 = ssub.s32 %s20, %s31
    %s78 = sor.u32 %s76, %s77
    %p79 = scmp.eq.s32.totalorder %s78, 0
    %s81 = sadd.s32 %s80, 1
    %s82 = scalar_select %p79, %s80, %s81
    %p85 = pneg %p79
    %p86 = scmp.eq.s32.totalorder %s10, 7
    %p87 = por %p85, %p86
    %p88 = scmp.ne.s32.totalorder %s80, %s83
    %p89 = scmp.eq.s32.totalorder %s10, 0
    %p90 = por %p88, %p89
    %p91 = scmp.ne.s32.totalorder %s80, %s83
    %p92 = scmp.eq.s32.totalorder %s15, 7
    %p93 = por %p91, %p92
    %p94 = scmp.ne.s32.totalorder %s83, %s84
    %p95 = scmp.eq.s32.totalorder %s15, 0
    %p96 = por %p94, %p95
    %p97 = scmp.ne.s32.totalorder %s83, %s84
    %p98 = scmp.eq.s32.totalorder %s16, 7
    %p99 = por %p97, %p98
    %p101 = scmp.ne.s32.totalorder %s84, %s100
    %p102 = scmp.eq.s32.totalorder %s16, 0
    %p103 = por %p101, %p102
    %s104 = ssub.s32 %s17, %s43
    %s105 = ssub.s32 %s18, %s39
    %s106 = sor.u32 %s104, %s105
    %s107 = ssub.s32 %s20, %s31
    %s108 = sor.u32 %s106, %s107
    %p109 = scmp.eq.s32.totalorder %s108, 0
    %s111 = sadd.s32 %s110, 1
    %s112 = scalar_select %p109, %s110, %s111
    %p115 = pneg %p109
    %p116 = scmp.eq.s32.totalorder %s10, 7
    %p117 = por %p115, %p116
    %p118 = scmp.ne.s32.totalorder %s110, %s113
    %p119 = scmp.eq.s32.totalorder %s10, 0
    %p120 = por %p118, %p119
    %p121 = scmp.ne.s32.totalorder %s110, %s113
    %p122 = scmp.eq.s32.totalorder %s15, 7
    %p123 = por %p121, %p122
    %p124 = scmp.ne.s32.totalorder %s113, %s114
    %p125 = scmp.eq.s32.totalorder %s15, 0
    %p126 = por %p124, %p125
    %p127 = scmp.ne.s32.totalorder %s113, %s114
    %p128 = scmp.eq.s32.totalorder %s16, 7
    %p129 = por %p127, %p128
    %p131 = scmp.ne.s32.totalorder %s114, %s130
    %p132 = scmp.eq.s32.totalorder %s16, 0
    %p133 = por %p131, %p132
    %s134 = ssub.s32 %s19, %s35
    %s135 = ssub.s32 %s20, %s31
    %s136 = sor.u32 %s134, %s135
    %p137 = scmp.eq.s32.totalorder %s136, 0
    %s139 = sadd.s32 %s138, 1
    %s140 = scalar_select %p137, %s138, %s139
    %p143 = pneg %p137
    %p144 = scmp.eq.s32.totalorder %s10, 7
    %p145 = por %p143, %p144
    %p146 = scmp.ne.s32.totalorder %s138, %s141
    %p147 = scmp.eq.s32.totalorder %s10, 0
    %p148 = por %p146, %p147
    %p149 = scmp.ne.s32.totalorder %s138, %s141
    %p150 = scmp.eq.s32.totalorder %s15, 7
    %p151 = por %p149, %p150
    %p152 = scmp.ne.s32.totalorder %s141, %s142
    %p153 = scmp.eq.s32.totalorder %s15, 0
    %p154 = por %p152, %p153
    %p155 = scmp.ne.s32.totalorder %s141, %s142
    %p156 = scmp.eq.s32.totalorder %s16, 7
    %p157 = por %p155, %p156
    %p159 = scmp.ne.s32.totalorder %s142, %s158
    %p160 = scmp.eq.s32.totalorder %s16, 0
    %p161 = por %p159, %p160
    %s162 = ssub.s32 %s17, %s43
    %s163 = ssub.s32 %s18, %s39
    %s164 = sor.u32 %s162, %s163
    %s165 = ssub.s32 %s19, %s35
    %s166 = sor.u32 %s164, %s165
    %p167 = scmp.eq.s32.totalorder %s166, 0
    %s169 = sadd.s32 %s168, 1
    %s170 = scalar_select %p167, %s168, %s169
    %p173 = pneg %p167
    %p174 = scmp.eq.s32.totalorder %s10, 7
    %p175 = por %p173, %p174
    %p176 = scmp.ne.s32.totalorder %s168, %s171
    %p177 = scmp.eq.s32.totalorder %s10, 0
    %p178 = por %p176, %p177
    %p179 = scmp.ne.s32.totalorder %s168, %s171
    %p180 = scmp.eq.s32.totalorder %s15, 7
    %p181 = por %p179, %p180
    %p182 = scmp.ne.s32.totalorder %s171, %s172
    %p183 = scmp.eq.s32.totalorder %s15, 0
    %p184 = por %p182, %p183
    %p185 = scmp.ne.s32.totalorder %s171, %s172
    %p186 = scmp.eq.s32.totalorder %s16, 7
    %p187 = por %p185, %p186
    %p189 = scmp.ne.s32.totalorder %s172, %s188
    %p190 = scmp.eq.s32.totalorder %s16, 0
    %p191 = por %p189, %p190
    %p192 = scmp.le.s32.totalorder 1, %s10
    %p193 = scmp.lt.s32.totalorder %s10, 9
    %p194 = pnand %p192, %p193
    %p195 = pneg %p194
    // Predicated region
    $region9: #{_lambda_.4} parent=5 // pred_check
      _
    $region10: #{_lambda_.4} parent=5 // pred_check_branch
      %197 = sbr.rel (%p194) target = $region12
    $region11: #{_lambda_.4} parent=5 // pred_region
      %s198 = ssub.s32 %s10, 1
      // Predicated region
      $region13: #{_lambda_.4} parent=11 // pred_check
        %p199 = pneg %p154
      $region14: #{_lambda_.4} parent=11 // pred_check_branch
        %201 = sbr.rel (%p199) target = $region16
      $region15: #{_lambda_.4} parent=11 // pred_region
        %p202 = scmp.lt.s32.totalorder %s23, 0
        %s203 = scalar_select %p202, %s23, 0
        %p204 = scmp.lt.s32.totalorder %s24, 0
        %s205 = scalar_select %p204, %s24, 0
        %s206 = sadd.s32 %s205, %s203
        %s207 = smul.addr %s206, 4
        %s208 = scalar_lea.vmem %s3, %s207
      $region16: #{_lambda_.4} parent=11 // pred_fallthru
        _
    $region12: #{_lambda_.4} parent=5 // pred_fallthru
      _
    %p209 = scmp.lt.s32.totalorder %s10, 8
    // Predicated region
    $region17: #{_lambda_.4} parent=5 // pred_check
      %p210 = pneg %p209
    $region18: #{_lambda_.4} parent=5 // pred_check_branch
      %212 = sbr.rel (%p210) target = $region20
    $region19: #{_lambda_.4} parent=5 // pred_region
      // Predicated region
      $region21: #{_lambda_.4} parent=19 // pred_check
        %p213 = pneg %p60
      $region22: #{_lambda_.4} parent=19 // pred_check_branch
        %215 = sbr.rel (%p213) target = $region24
      $region23: #{_lambda_.4} parent=19 // pred_region
        %p216 = scmp.lt.s32.totalorder %s17, 1
        %s217 = scalar_select %p216, %s17, 1
        %p218 = scmp.lt.s32.totalorder %s18, 3
        %s219 = scalar_select %p218, %s18, 3
        %p220 = scmp.lt.s32.totalorder %s19, 0
        %s221 = scalar_select %p220, %s19, 0
        %s222 = sadd.s32 %s221, %s219
        %s223 = smul.addr %s217, 4
        %s224 = sadd.s32 %s222, %s223
        %s225 = smul.addr %s224, 4
        %s226 = scalar_lea.vmem %s0, %s225
      $region24: #{_lambda_.4} parent=19 // pred_fallthru
        _
      // Predicated region
      $region25: #{_lambda_.4} parent=19 // pred_check
        %p227 = pneg %p90
      $region26: #{_lambda_.4} parent=19 // pred_check_branch
        %229 = sbr.rel (%p227) target = $region28
      $region27: #{_lambda_.4} parent=19 // pred_region
        %p230 = scmp.lt.s32.totalorder %s17, 1
        %s231 = scalar_select %p230, %s17, 1
        %p232 = scmp.lt.s32.totalorder %s18, 3
        %s233 = scalar_select %p232, %s18, 3
        %p234 = scmp.lt.s32.totalorder %s20, 0
        %s235 = scalar_select %p234, %s20, 0
        %s236 = sadd.s32 %s235, %s233
        %s237 = smul.addr %s231, 4
        %s238 = sadd.s32 %s236, %s237
        %s239 = smul.addr %s238, 4
        %s240 = scalar_lea.vmem %s1, %s239
      $region28: #{_lambda_.4} parent=19 // pred_fallthru
        _
      // Predicated region
      $region29: #{_lambda_.4} parent=19 // pred_check
        %p241 = pneg %p120
      $region30: #{_lambda_.4} parent=19 // pred_check_branch
        %243 = sbr.rel (%p241) target = $region32
      $region31: #{_lambda_.4} parent=19 // pred_region
        %p244 = scmp.lt.s32.totalorder %s17, 1
        %s245 = scalar_select %p244, %s17, 1
        %p246 = scmp.lt.s32.totalorder %s18, 3
        %s247 = scalar_select %p246, %s18, 3
        %p248 = scmp.lt.s32.totalorder %s20, 0
        %s249 = scalar_select %p248, %s20, 0
        %s250 = sadd.s32 %s249, %s247
        %s251 = smul.addr %s245, 4
        %s252 = sadd.s32 %s250, %s251
        %s253 = smul.addr %s252, 4
        %s254 = scalar_lea.vmem %s2, %s253
      $region32: #{_lambda_.4} parent=19 // pred_fallthru
        _
    $region20: #{_lambda_.4} parent=5 // pred_fallthru
      _
    %p255 = scmp.le.s32.totalorder 1, %s10
    %p256 = scmp.lt.s32.totalorder %s10, 9
    %p257 = pnand %p255, %p256
    %p258 = pneg %p257
    // Predicated region
    $region33: #{_lambda_.4} parent=5 // pred_check
      _
    $region34: #{_lambda_.4} parent=5 // pred_check_branch
      %260 = sbr.rel (%p257) target = $region36
    $region35: #{_lambda_.4} parent=5 // pred_region
      %s261 = ssub.s32 %s10, 1
      %p262 = scmp.lt.s32.totalorder %s21, 1
      %s263 = scalar_select %p262, %s21, 1
      %p264 = scmp.lt.s32.totalorder %s22, 3
      %s265 = scalar_select %p264, %s22, 3
      %p266 = scmp.lt.s32.totalorder %s23, 0
      %s267 = scalar_select %p266, %s23, 0
      %s268 = sadd.s32 %s267, %s265
      %s269 = smul.addr %s263, 4
      %s270 = sadd.s32 %s268, %s269
      %s271 = smul.addr %s270, 4
      %s272 = scalar_lea.vmem %s0, %s271
      %p273 = pneg %p66
      %p274 = pneg %p63
      %p275 = scmp.lt.s32.totalorder %s21, 1
      %s276 = scalar_select %p275, %s21, 1
      %p277 = scmp.lt.s32.totalorder %s22, 3
      %s278 = scalar_select %p277, %s22, 3
      %p279 = scmp.lt.s32.totalorder %s24, 0
      %s280 = scalar_select %p279, %s24, 0
      %s281 = sadd.s32 %s280, %s278
      %s282 = smul.addr %s276, 4
      %s283 = sadd.s32 %s281, %s282
      %s284 = smul.addr %s283, 4
      %s285 = scalar_lea.vmem %s1, %s284
      %p286 = pneg %p96
      %p287 = pneg %p93
      %p288 = scmp.lt.s32.totalorder %s21, 1
      %s289 = scalar_select %p288, %s21, 1
      %p290 = scmp.lt.s32.totalorder %s22, 3
      %s291 = scalar_select %p290, %s22, 3
      %p292 = scmp.lt.s32.totalorder %s24, 0
      %s293 = scalar_select %p292, %s24, 0
      %s294 = sadd.s32 %s293, %s291
      %s295 = smul.addr %s289, 4
      %s296 = sadd.s32 %s294, %s295
      %s297 = smul.addr %s296, 4
      %s298 = scalar_lea.vmem %s2, %s297
      %p299 = pneg %p126
      %p300 = pneg %p123
      %p301 = scmp.lt.s32.totalorder %s23, 0
      %s302 = scalar_select %p301, %s23, 0
      %p303 = scmp.lt.s32.totalorder %s24, 0
      %s304 = scalar_select %p303, %s24, 0
      %s305 = sadd.s32 %s304, %s302
      %s306 = smul.addr %s305, 4
      %s307 = scalar_lea.vmem %s3, %s306
      %p308 = pneg %p154
      %p309 = pneg %p151
      %p310 = pneg %p184
      %p311 = pneg %p181
      %p312 = scmp.lt.s32.totalorder %s21, 1
      %s313 = scalar_select %p312, %s21, 1
      %p314 = scmp.lt.s32.totalorder %s22, 3
      %s315 = scalar_select %p314, %s22, 3
      %p316 = scmp.lt.s32.totalorder %s23, 0
      %s317 = scalar_select %p316, %s23, 0
      %s318 = sadd.s32 %s317, %s315
      %s319 = smul.addr %s313, 4
      %s320 = sadd.s32 %s318, %s319
      %s321 = smul.addr %s320, 4
      %s322 = scalar_lea.vmem %s4, %s321
      %p323 = scmp.lt.s32.totalorder %s21, 1
      %s324 = scalar_select %p323, %s21, 1
      %p325 = scmp.lt.s32.totalorder %s22, 3
      %s326 = scalar_select %p325, %s22, 3
      %p327 = scmp.lt.s32.totalorder %s23, 0
      %s328 = scalar_select %p327, %s23, 0
      %s329 = sadd.s32 %s328, %s326
      %s330 = smul.addr %s324, 4
      %s331 = sadd.s32 %s329, %s330
      %s332 = smul.addr %s331, 4
      %s333 = scalar_lea.vmem %s0, %s332
      %p334 = scmp.lt.s32.totalorder %s21, 1
      %s335 = scalar_select %p334, %s21, 1
      %p336 = scmp.lt.s32.totalorder %s22, 3
      %s337 = scalar_select %p336, %s22, 3
      %p338 = scmp.lt.s32.totalorder %s24, 0
      %s339 = scalar_select %p338, %s24, 0
      %s340 = sadd.s32 %s339, %s337
      %s341 = smul.addr %s335, 4
      %s342 = sadd.s32 %s340, %s341
      %s343 = smul.addr %s342, 4
      %s344 = scalar_lea.vmem %s1, %s343
      %p345 = scmp.lt.s32.totalorder %s21, 1
      %s346 = scalar_select %p345, %s21, 1
      %p347 = scmp.lt.s32.totalorder %s22, 3
      %s348 = scalar_select %p347, %s22, 3
      %p349 = scmp.lt.s32.totalorder %s24, 0
      %s350 = scalar_select %p349, %s24, 0
      %s351 = sadd.s32 %s350, %s348
      %s352 = smul.addr %s346, 4
      %s353 = sadd.s32 %s351, %s352
      %s354 = smul.addr %s353, 4
      %s355 = scalar_lea.vmem %s2, %s354
      %p356 = scmp.lt.s32.totalorder %s23, 0
      %s357 = scalar_select %p356, %s23, 0
      %p358 = scmp.lt.s32.totalorder %s24, 0
      %s359 = scalar_select %p358, %s24, 0
      %s360 = sadd.s32 %s359, %s357
      %s361 = smul.addr %s360, 4
      %s362 = scalar_lea.vmem %s3, %s361
      %p363 = scmp.lt.s32.totalorder %s21, 1
      %s364 = scalar_select %p363, %s21, 1
      %p365 = scmp.lt.s32.totalorder %s22, 3
      %s366 = scalar_select %p365, %s22, 3
      %p367 = scmp.lt.s32.totalorder %s23, 0
      %s368 = scalar_select %p367, %s23, 0
      %s369 = sadd.s32 %s368, %s366
      %s370 = smul.addr %s364, 4
      %s371 = sadd.s32 %s369, %s370
      %s372 = smul.addr %s371, 4
      %s373 = scalar_lea.vmem %s4, %s372
      %p375 = scmp.eq.s32.totalorder %s24, 0
      // Predicated region
      $region37: #{_lambda_.4} parent=35 // pred_check
        %p376 = pneg %p375
      $region38: #{_lambda_.4} parent=35 // pred_check_branch
        %378 = sbr.rel (%p376) target = $region40
      $region39: #{_lambda_.4} parent=35 // pred_region
        %vm379 = vcmask 7168
        %380 = vst.msk [vmem:[#allocation2] sm:$0xff] %vm379, -inf
        %381 = vst.msk [vmem:[#allocation3] sm:$0xff] %vm379, 0.0
        %vm382 = vcmask 64512
        %383 = vst.msk [vmem:[#allocation4] sm:$0xff] %vm382, 0.0
      $region40: #{_lambda_.4} parent=35 // pred_fallthru
        _
      %v384 = vld [vmem:[%s333] sm:$0xf]
      %v385 = vld [vmem:[%s344] sm:$0xf]
      %v386 = vld [vmem:[%s355] sm:$0xf]
      %v387 = vld [vmem:[%s362] sm:$0xf]
      %v388 = vunpack.c.l.bf16 %v387
      %vm389 = vcmask 64512
      %v391 = vsel %vm389, %v384, 0
      %v394 = vsel %vm389, %v385, 0
      %396 = vmatprep.subr.bf16.mxu0 0
      %397 = vmatpush1.bf16.xpose.msra.mxu0 %v394
      %398 = vmatprep.subr.bf16.mxu0 0
      %399 = vmatpush1.bf16.xpose.msra.mxu0 0
      %400 = vmatprep.subr.bf16.mxu0 0
      %401 = vmatpush1.bf16.xpose.msra.mxu0 0
      %402 = vmatprep.subr.bf16.mxu0 0
      %403 = vmatpush1.bf16.xpose.msra.mxu0 0
      %404 = vmatprep.subr.bf16.mxu0 0
      %405 = vmatpush1.bf16.xpose.msra.mxu0 0
      %406 = vmatprep.subr.bf16.mxu0 0
      %407 = vmatpush1.bf16.xpose.msra.mxu0 0
      %408 = vmatprep.subr.bf16.mxu0 0
      %409 = vmatpush1.bf16.xpose.msra.mxu0 0
      %410 = vmatprep.subr.bf16.mxu0 0
      %411 = vmatpush1.bf16.xpose.msra.mxu0 0
      %412 = vmatprep.subr.bf16.mxu0 0
      %413 = vmatpush1.bf16.xpose.msra.mxu0 0
      %414 = vmatprep.subr.bf16.mxu0 0
      %415 = vmatpush1.bf16.xpose.msra.mxu0 0
      %416 = vmatprep.subr.bf16.mxu0 0
      %417 = vmatpush1.bf16.xpose.msra.mxu0 0
      %418 = vmatprep.subr.bf16.mxu0 0
      %419 = vmatpush1.bf16.xpose.msra.mxu0 0
      %420 = vmatprep.subr.bf16.mxu0 0
      %421 = vmatpush1.bf16.xpose.msra.mxu0 0
      %422 = vmatprep.subr.bf16.mxu0 0
      %423 = vmatpush1.bf16.xpose.msra.mxu0 0
      %424 = vmatprep.subr.bf16.mxu0 0
      %425 = vmatpush1.bf16.xpose.msra.mxu0 0
      %426 = vmatprep.subr.bf16.mxu0 0
      %427 = vmatpush1.bf16.xpose.msra.mxu0 0
      %428 = vmatprep.mubr.bf16.mxu0 0
      %429 = vmatmul.mubr.bf16.gmra.mrb[0].mxu0 %v391
      %v430 = vpop.f32.mrb[0].mxu0
      %v431 = vadd.f32 %v388, %v430
      %v432 = vpop.f32.mrb[0].mxu0
      %v433 = vpop.f32.mrb[0].mxu0
      %v434 = vpop.f32.mrb[0].mxu0
      %435 = vdwg.mxu0
      %v436 = vld [vmem:[#allocation2] sm:$0xff]
      %v437 = vsel %vm389, %v431, -inf
      %438 = vmax.xlane.f32.xlu0 %v437
      %v439 = vpop.xlane.xlu0 %438
      %v440 = vmax.f32 %v436, %v439
      %v441 = vsub.f32 %v436, %v440
      %v442 = vmul.f32 %v441, 1.442695
      %v443 = vpow.pop %v442
      %445 = vset.pattern.permute.xlu0 0
      %446 = vperm.xlu0 %445, %v440
      %v447 = vpop.permute.xlu0 %446
      %v449 = vsub.f32 %v431, %v447
      %v450 = vmul.f32 %v449, 1.442695
      %v451 = vpow.pop %v450
      %v452 = vld [vmem:[#allocation3] sm:$0xff]
      %v453 = vmul.f32 %v443, %v452
      %v454 = vsel %vm389, %v451, 0.0
      %455 = vadd.xlane.f32.xlu0 %v454
      %v456 = vpop.xlane.xlu0 %455
      %v457 = vadd.f32 %v453, %v456
      %vm458 = vcmask 7168
      %459 = vst.msk [vmem:[#allocation3] sm:$0xff] %vm458, %v457
      %v460 = vld [vmem:[#allocation4] sm:$0xff]
      %462 = vset.pattern.permute.xlu0 0
      %463 = vperm.xlu0 %462, %v443
      %v464 = vpop.permute.xlu0 %463
      %v466 = vmul.f32 %v464, %v460
      %v467 = vpack.c.bf16 %v451, %v451
      %v469 = vsel %vm389, %v467, 0
      %vm471 = vcmask 1043456
      %v473 = vsel %vm471, %v386, 0
      %475 = vmatprep.subr.bf16.mxu0 0
      %476 = vmatpush1.bf16.msra.mxu0 %v473
      %477 = vmatprep.subr.bf16.mxu0 0
      %478 = vmatpush1.bf16.msra.mxu0 0
      %479 = vmatprep.subr.bf16.mxu0 0
      %480 = vmatpush1.bf16.msra.mxu0 0
      %481 = vmatprep.subr.bf16.mxu0 0
      %482 = vmatpush1.bf16.msra.mxu0 0
      %483 = vmatprep.subr.bf16.mxu0 0
      %484 = vmatpush1.bf16.msra.mxu0 0
      %485 = vmatprep.subr.bf16.mxu0 0
      %486 = vmatpush1.bf16.msra.mxu0 0
      %487 = vmatprep.subr.bf16.mxu0 0
      %488 = vmatpush1.bf16.msra.mxu0 0
      %489 = vmatprep.subr.bf16.mxu0 0
      %490 = vmatpush1.bf16.msra.mxu0 0
      %491 = vmatprep.subr.bf16.mxu0 0
      %492 = vmatpush1.bf16.msra.mxu0 0
      %493 = vmatprep.subr.bf16.mxu0 0
      %494 = vmatpush1.bf16.msra.mxu0 0
      %495 = vmatprep.subr.bf16.mxu0 0
      %496 = vmatpush1.bf16.msra.mxu0 0
      %497 = vmatprep.subr.bf16.mxu0 0
      %498 = vmatpush1.bf16.msra.mxu0 0
      %499 = vmatprep.subr.bf16.mxu0 0
      %500 = vmatpush1.bf16.msra.mxu0 0
      %501 = vmatprep.subr.bf16.mxu0 0
      %502 = vmatpush1.bf16.msra.mxu0 0
      %503 = vmatprep.subr.bf16.mxu0 0
      %504 = vmatpush1.bf16.msra.mxu0 0
      %505 = vmatprep.subr.bf16.mxu0 0
      %506 = vmatpush1.bf16.msra.mxu0 0
      %507 = vmatprep.mubr.bf16.mxu0 0
      %508 = vmatmul.mubr.bf16.gmra.mrb[0].mxu0 %v469
      %v509 = vpop.f32.mrb[0].mxu0
      %v510 = vadd.f32 0.0, %v509
      %v511 = vpop.f32.mrb[0].mxu0
      %v512 = vpop.f32.mrb[0].mxu0
      %v513 = vpop.f32.mrb[0].mxu0
      %514 = vdwg.mxu0
      %v515 = vadd.f32 %v466, %v510
      %516 = vst.msk [vmem:[#allocation4] sm:$0xff] %vm389, %v515
      %517 = vst.msk [vmem:[#allocation2] sm:$0xff] %vm458, %v440
      // Predicated region
      $region41: #{_lambda_.4} parent=35 // pred_check
        %p518 = pneg %p375
      $region42: #{_lambda_.4} parent=35 // pred_check_branch
        %520 = sbr.rel (%p518) target = $region44
      $region43: #{_lambda_.4} parent=35 // pred_region
        %v521 = vld [vmem:[#allocation3] sm:$0xff]
        %v522 = vrcp.pop %v521
        %v523 = vld [vmem:[#allocation4] sm:$0xff]
        %525 = vset.pattern.permute.xlu0 0
        %526 = vperm.xlu0 %525, %v522
        %v527 = vpop.permute.xlu0 %526
        %v529 = vmul.f32 %v523, %v527
        %v530 = vpack.c.bf16 %v529, %v529
        %vm531 = vcmask 60416
        %532 = vst.msk [vmem:[%s373] sm:$0xf] %vm531, %v530
      $region44: #{_lambda_.4} parent=35 // pred_fallthru
        _
      %p533 = scmp.lt.s32.totalorder %s21, 1
      %s534 = scalar_select %p533, %s21, 1
      %p535 = scmp.lt.s32.totalorder %s22, 3
      %s536 = scalar_select %p535, %s22, 3
      %p537 = scmp.lt.s32.totalorder %s23, 0
      %s538 = scalar_select %p537, %s23, 0
      %s539 = sadd.s32 %s538, %s536
      %s540 = smul.addr %s534, 4
      %s541 = sadd.s32 %s539, %s540
      %s542 = smul.addr %s541, 4
      %s543 = scalar_lea.vmem %s4, %s542
      // Predicated region
      $region45: #{_lambda_.4} parent=35 // pred_check
        %p544 = pneg %p181
      $region46: #{_lambda_.4} parent=35 // pred_check_branch
        %546 = sbr.rel (%p544) target = $region48
      $region47: #{_lambda_.4} parent=35 // pred_region
        _
      $region48: #{_lambda_.4} parent=35 // pred_fallthru
        _
    $region36: #{_lambda_.4} parent=5 // pred_fallthru
      _
    %p547 = scmp.le.s32.totalorder 2, %s10
    // Predicated region
    $region49: #{_lambda_.4} parent=5 // pred_check
      %p548 = pneg %p547
    $region50: #{_lambda_.4} parent=5 // pred_check_branch
      %550 = sbr.rel (%p548) target = $region52
    $region51: #{_lambda_.4} parent=5 // pred_region
      %s551 = ssub.s32 %s10, 2
      // Predicated region
      $region53: #{_lambda_.4} parent=51 // pred_check
        %p552 = pneg %p187
      $region54: #{_lambda_.4} parent=51 // pred_check_branch
        %554 = sbr.rel (%p552) target = $region56
      $region55: #{_lambda_.4} parent=51 // pred_region
        %p555 = scmp.lt.s32.totalorder %s25, 1
        %s556 = scalar_select %p555, %s25, 1
        %p557 = scmp.lt.s32.totalorder %s26, 3
        %s558 = scalar_select %p557, %s26, 3
        %p559 = scmp.lt.s32.totalorder %s27, 0
        %s560 = scalar_select %p559, %s27, 0
        %s561 = sadd.s32 %s560, %s558
        %s562 = smul.addr %s556, 4
        %s563 = sadd.s32 %s561, %s562
        %s564 = smul.addr %s563, 4
        %s565 = scalar_lea.vmem %s4, %s564
      $region56: #{_lambda_.4} parent=51 // pred_fallthru
        _
    $region52: #{_lambda_.4} parent=5 // pred_fallthru
      _
  $region6: #{_lambda_.4} parent=0 // loop_footer
    %s14 = sadd.s32 1, %s10
  $region7: #{_lambda_.4} parent=0 // loop_footer_branch
    %9 = sbr.rel target = $region3
  $region8: #{_lambda_.4} parent=0 // loop_exit
    _

// kernel: _lambda_.5
$region0: #{_lambda_.5}
  #allocation0 [shape = 'u32[]', space=smem, size = 0x4, offset = 0x4, fixed_abs, tag = 'smem constant byte address 0x4 - core index']
  #allocation1 [shape = 'u32[144,128]{1,0:T(1,128)}', space=vmem, size = 0x12000, scoped, tag = 'internal scratch']
  #allocation2 [shape = 'f32[16,32]{1,0:T(8,128)}', space=vmem, size = 0x2000, scoped, tag = 'scratch operand']
  %s0 = inlined_call_operand.vmem [shape: bf16[16,32], index: 0, kind: input, shape index: {}]
  %s1 = inlined_call_operand.vmem [shape: bf16[32,32], index: 1, kind: input, shape index: {}]
  %s2 = inlined_call_operand.vmem [shape: f32[1,32], index: 2, kind: input, shape index: {}]
  %s3 = inlined_call_operand.hbm [shape: f32[16,32], index: 3, kind: output, shape index: {}]
  %s4 = sld [smem:[#allocation0]]
  $region30: #{_lambda_.5} parent=0
    _
  %s6 = ssub.s32 1, %s4
  %s7 = scalar_select 0, %s6, %s4
  $region1: #{_lambda_.5} parent=0
    #allocation3 [shape = 'u8[8192]{0}', space=vmem, size = 0x2000, scoped, tag = 'output window, operand 0, single buffered']
    #allocation4 [shape = 's32[1]{0}', space=sflag, size = 0x4, scoped, tag = 'scoped memory for _lambda_.5']
    %8 = vsyncpa [#allocation4], 0
    // Predicated region
    $region2: #{_lambda_.5} parent=1 // pred_check
      _
    $region3: #{_lambda_.5} parent=1 // pred_check_branch
      %10 = sbr.rel (0) target = $region5
    $region4: #{_lambda_.5} parent=1 // pred_region
      _
    $region5: #{_lambda_.5} parent=1 // pred_fallthru
      _
    // Predicated region
    $region6: #{_lambda_.5} parent=1 // pred_check
      _
    $region7: #{_lambda_.5} parent=1 // pred_check_branch
      %12 = sbr.rel (0) target = $region9
    $region8: #{_lambda_.5} parent=1 // pred_region
      _
    $region9: #{_lambda_.5} parent=1 // pred_fallthru
      _
    // Predicated region
    $region10: #{_lambda_.5} parent=1 // pred_check
      _
    $region11: #{_lambda_.5} parent=1 // pred_check_branch
      %14 = sbr.rel (0) target = $region13
    $region12: #{_lambda_.5} parent=1 // pred_region
      _
    $region13: #{_lambda_.5} parent=1 // pred_fallthru
      _
    %p16 = scmp.eq.s32.totalorder 0, 0
    // Predicated region
    $region14: #{_lambda_.5} parent=1 // pred_check
      %p17 = pneg %p16
    $region15: #{_lambda_.5} parent=1 // pred_check_branch
      %19 = sbr.rel (%p17) target = $region17
    $region16: #{_lambda_.5} parent=1 // pred_region
      %vm20 = vcmask 261120
      %21 = vst.msk [vmem:[#allocation2] sm:$0xff] %vm20, 0.0
      %22 = vst.msk [vmem:[#allocation2 + $0x8] sm:$0xff] %vm20, 0.0
    $region17: #{_lambda_.5} parent=1 // pred_fallthru
      _
    %v23 = vld [vmem:[#allocation2] sm:$0xff]
    %v24 = vld [vmem:[#allocation2 + $0x8] sm:$0xff]
    %v25 = vld [vmem:[%s0] sm:$0xf]
    %v26 = vld [vmem:[%s0 + $0x4] sm:$0xf]
    %v27 = vld [vmem:[%s1] sm:$0xf]
    %v28 = vld [vmem:[%s1 + $0x4] sm:$0xf]
    %v29 = vld [vmem:[%s1 + $0x8] sm:$0xf]
    %v30 = vld [vmem:[%s1 + $0xc] sm:$0xf]
    %v33 = vunpack.c.l.b16 %v25
    %v34 = vunpack.c.l.b16 %v26
    %v35 = vpack.c.b16 %v34, %v33
    %v40 = vunpack.c.l.b16 %v27
    %v41 = vunpack.c.l.b16 %v28
    %v42 = vunpack.c.l.b16 %v29
    %v43 = vunpack.c.l.b16 %v30
    %v44 = vpack.c.b16 %v41, %v40
    %v45 = vpack.c.b16 %v43, %v42
    %vm48 = vcmask 261120
    %v50 = vsel %vm48, %v35, 0
    %52 = vmatprep.subr.bf16.mxu0 0
    %53 = vmatpush1.bf16.msra.mxu0 %v44
    %54 = vmatprep.subr.bf16.mxu0 0
    %55 = vmatpush1.bf16.msra.mxu0 %v45
    %56 = vmatprep.subr.bf16.mxu0 0
    %57 = vmatpush1.bf16.msra.mxu0 0
    %58 = vmatprep.subr.bf16.mxu0 0
    %59 = vmatpush1.bf16.msra.mxu0 0
    %60 = vmatprep.subr.bf16.mxu0 0
    %61 = vmatpush1.bf16.msra.mxu0 0
    %62 = vmatprep.subr.bf16.mxu0 0
    %63 = vmatpush1.bf16.msra.mxu0 0
    %64 = vmatprep.subr.bf16.mxu0 0
    %65 = vmatpush1.bf16.msra.mxu0 0
    %66 = vmatprep.subr.bf16.mxu0 0
    %67 = vmatpush1.bf16.msra.mxu0 0
    %68 = vmatprep.subr.bf16.mxu0 0
    %69 = vmatpush1.bf16.msra.mxu0 0
    %70 = vmatprep.subr.bf16.mxu0 0
    %71 = vmatpush1.bf16.msra.mxu0 0
    %72 = vmatprep.subr.bf16.mxu0 0
    %73 = vmatpush1.bf16.msra.mxu0 0
    %74 = vmatprep.subr.bf16.mxu0 0
    %75 = vmatpush1.bf16.msra.mxu0 0
    %76 = vmatprep.subr.bf16.mxu0 0
    %77 = vmatpush1.bf16.msra.mxu0 0
    %78 = vmatprep.subr.bf16.mxu0 0
    %79 = vmatpush1.bf16.msra.mxu0 0
    %80 = vmatprep.subr.bf16.mxu0 0
    %81 = vmatpush1.bf16.msra.mxu0 0
    %82 = vmatprep.subr.bf16.mxu0 0
    %83 = vmatpush1.bf16.msra.mxu0 0
    %84 = vmatprep.mubr.bf16.mxu0 0
    %85 = vmatmul.mubr.bf16.gmra.mrb[0].mxu0 %v50
    %v86 = vpop.f32.mrb[0].mxu0
    %v87 = vadd.f32 0.0, %v86
    %v88 = vpop.f32.mrb[0].mxu0
    %v89 = vpop.f32.mrb[0].mxu0
    %v90 = vadd.f32 0.0, %v89
    %v91 = vpop.f32.mrb[0].mxu0
    %92 = vdwg.mxu0
    %v93 = vadd.f32 %v23, %v87
    %v94 = vadd.f32 %v24, %v90
    %95 = vst.msk [vmem:[#allocation2] sm:$0xff] %vm48, %v93
    %96 = vst.msk [vmem:[#allocation2 + $0x8] sm:$0xff] %vm48, %v94
    // Predicated region
    $region18: #{_lambda_.5} parent=1 // pred_check
      %p97 = pneg %p16
    $region19: #{_lambda_.5} parent=1 // pred_check_branch
      %99 = sbr.rel (%p97) target = $region21
    $region20: #{_lambda_.5} parent=1 // pred_region
      %v100 = vld [vmem:[#allocation2] sm:$0xff]
      %v101 = vld [vmem:[#allocation2 + $0x8] sm:$0xff]
      %v102 = vld [vmem:[%s2] sm:$0x1]
      %v104 = vlaneseq
      %v105 = vshrl.u32 %v104, 7
      %v106 = vsub.s32 0, %v105
      %v107 = vrot.slane %v102, %v106
      %v109 = vadd.f32 %v100, %v107
      %v110 = vadd.f32 %v101, %v107
      %111 = vst.msk [vmem:[#allocation3] sm:$0xff] %vm48, %v109
      %112 = vst.msk [vmem:[#allocation3 + $0x8] sm:$0xff] %vm48, %v110
    $region21: #{_lambda_.5} parent=1 // pred_fallthru
      _
    // Predicated region
    $region22: #{_lambda_.5} parent=1 // pred_check
      _
    $region23: #{_lambda_.5} parent=1 // pred_check_branch
      %114 = sbr.rel (0) target = $region25
    $region24: #{_lambda_.5} parent=1 // pred_region
      %s116 = ssub.s32 256, 256
      %117 = vsyncadd [#allocation4], %s116
      %s118 = sshll.u32 [#allocation3], 4
      %s119 = int_to_ptr.vmem [resolvable:$true] %s118
      %124 = dma.vmem_to_hbm [thread:$0]  %s119, 256, %s3, [#allocation4], 128, 128, 8
    $region25: #{_lambda_.5} parent=1 // pred_fallthru
      _
    // Predicated region
    $region26: #{_lambda_.5} parent=1 // pred_check
      _
    $region27: #{_lambda_.5} parent=1 // pred_check_branch
      %126 = sbr.rel (0) target = $region29
    $region28: #{_lambda_.5} parent=1 // pred_region
      %127 = dma.done [#allocation4], 256
    $region29: #{_lambda_.5} parent=1 // pred_fallthru
      _
    %128 = vsyncpa [#allocation4], 1

</llo_original>
